<compile_context>
chip_gen: v7x
topology: tpu7x:2x2x1
jax: 0.10.0
libtpu: 0.0.40
codegen_flags: <defaults>
</compile_context>

<pallas_src>
import functools

import jax
import jax.numpy as jnp
from jax.experimental import pallas as pl
from jax.experimental.pallas import tpu as pltpu


def _round_up(x, m):
    return ((x + m - 1) // m) * m


def policy_net_kernel(x_ref, w1_ref, b1_ref, w2_ref, b2_ref, out_ref):
    # fc1: (TM, S)bf16 @ (S, H)bf16 -> f32 acc, + bias, ReLU   (MXU + VPU)
    h = jnp.dot(x_ref[...], w1_ref[...], preferred_element_type=jnp.float32)
    h = jnp.maximum(h + b1_ref[...], 0.0)
    # fc2: (TM, H)f32 @ (H, A)f32 -> f32, + bias, tanh          (MXU + VPU/EUP)
    a = jnp.dot(h, w2_ref[...], preferred_element_type=jnp.float32)
    a = jnp.tanh(a + b2_ref[...])
    out_ref[...] = a.astype(out_ref.dtype)


@functools.partial(jax.jit, static_argnames=("tm",))
def policy_network(state, w1, b1, w2, b2, *, tm=1024):
    """state: (B, state_dim); w1: (state_dim, hidden); b1: (hidden,);
    w2: (hidden, action_dim); b2: (action_dim,).  Returns (B, action_dim)."""
    B, S = state.shape
    H = w1.shape[1]
    A = w2.shape[1]

    ALIGN = 16  # bf16 sublane packing; also satisfies the (8,128) rule.
    tm_al = max(ALIGN, (int(tm) // ALIGN) * ALIGN)

    if B <= ALIGN:
        # Single block equal to the full batch dim: always legal, no padding.
        tile_m = B
    else:
        # At least 2 grid steps (so v7x's two TensorCores both get work),
        # capped at tm and 16-aligned.  tile_m <= B here, so only the last
        # block can be ragged (handled by Pallas masking, no jnp.pad copy).
        tile_m = min(tm_al, _round_up(pl.cdiv(B, 2), ALIGN))
    grid = (pl.cdiv(B, tile_m),)

    # Only x traffic scales with B -> cast it (and the matching w1) to bf16.
    # Everything downstream of the f32 accumulator stays f32.
    x = state.astype(jnp.bfloat16)
    w1_b = w1.astype(jnp.bfloat16)
    b1_2d = b1.reshape(1, H).astype(jnp.float32)
    w2_f = w2.astype(jnp.float32)
    b2_2d = b2.reshape(1, A).astype(jnp.float32)

    return pl.pallas_call(
        policy_net_kernel,
        out_shape=jax.ShapeDtypeStruct((B, A), state.dtype),
        grid=grid,
        in_specs=[
            pl.BlockSpec((tile_m, S), lambda i: (i, 0)),   # x: batch-tiled
            pl.BlockSpec((S, H), lambda i: (0, 0)),        # w1: resident
            pl.BlockSpec((1, H), lambda i: (0, 0)),        # b1: resident
            pl.BlockSpec((H, A), lambda i: (0, 0)),        # w2: resident
            pl.BlockSpec((1, A), lambda i: (0, 0)),        # b2: resident
        ],
        out_specs=pl.BlockSpec((tile_m, A), lambda i: (i, 0)),
        compiler_params=pltpu.CompilerParams(
            dimension_semantics=("parallel",),
        ),
    )(x, w1_b, b1_2d, w2_f, b2_2d)


def init_params(key, state_dim, hidden_dim, action_dim):
    """PyTorch nn.Linear-style init (uniform(+-1/sqrt(fan_in))); weights stored
    pre-transposed as (in_features, out_features)."""
    k1, k2, k3, k4 = jax.random.split(key, 4)
    bound1 = 1.0 / jnp.sqrt(jnp.float32(state_dim))
    bound2 = 1.0 / jnp.sqrt(jnp.float32(hidden_dim))
    w1 = jax.random.uniform(k1, (state_dim, hidden_dim), jnp.float32, -bound1, bound1)
    b1 = jax.random.uniform(k2, (hidden_dim,), jnp.float32, -bound1, bound1)
    w2 = jax.random.uniform(k3, (hidden_dim, action_dim), jnp.float32, -bound2, bound2)
    b2 = jax.random.uniform(k4, (action_dim,), jnp.float32, -bound2, bound2)
    return w1, b1, w2, b2


def policy_network_ref_f32(state, w1, b1, w2, b2):
    h = jnp.maximum(state @ w1 + b1[None, :], 0.0)
    return jnp.tanh(h @ w2 + b2[None, :])


def policy_network_ref_bf16(state, w1, b1, w2, b2):
    # Mirrors the kernel's numerics: bf16 inputs to fc1, f32 everywhere else.
    h = jnp.dot(state.astype(jnp.bfloat16), w1.astype(jnp.bfloat16),
                preferred_element_type=jnp.float32)
    h = jnp.maximum(h + b1[None, :], 0.0)
    return jnp.tanh(jnp.dot(h, w2, preferred_element_type=jnp.float32) + b2[None, :])


if __name__ == "__main__":
    state_dim = 16
    hidden_dim = 32
    action_dim = 8

    key = jax.random.PRNGKey(0)
    k_x, k_p, k_x2, k_x3 = jax.random.split(key, 4)
    w1, b1, w2, b2 = init_params(k_p, state_dim, hidden_dim, action_dim)

    # Small batch: single full-dim block, grid (1,).
    batch = 8
    state = jax.random.normal(k_x, (batch, state_dim), jnp.float32)
    out = jax.block_until_ready(policy_network(state, w1, b1, w2, b2))
    assert out.shape == (batch, action_dim), out.shape
    assert jnp.allclose(out, policy_network_ref_bf16(state, w1, b1, w2, b2), atol=1e-3), \
        "mismatch vs bf16 reference (small batch)"
    assert jnp.allclose(out, policy_network_ref_f32(state, w1, b1, w2, b2), atol=5e-2), \
        "mismatch vs f32 reference (small batch)"

    # Non-tile-aligned batch: 2 grid steps with a ragged (masked) last block.
    batch2 = 200
    state2 = jax.random.normal(k_x2, (batch2, state_dim), jnp.float32)
    out2 = jax.block_until_ready(policy_network(state2, w1, b1, w2, b2))
    assert out2.shape == (batch2, action_dim), out2.shape
    assert jnp.allclose(out2, policy_network_ref_bf16(state2, w1, b1, w2, b2), atol=1e-3), \
        "mismatch vs bf16 reference (tiled batch)"
    assert jnp.allclose(out2, policy_network_ref_f32(state2, w1, b1, w2, b2), atol=5e-2), \
        "mismatch vs f32 reference (tiled batch)"

    # Odd tiny batch: full-dim block with non-8-aligned row count.
    batch3 = 13
    state3 = jax.random.normal(k_x3, (batch3, state_dim), jnp.float32)
    out3 = jax.block_until_ready(policy_network(state3, w1, b1, w2, b2))
    assert out3.shape == (batch3, action_dim), out3.shape
    assert jnp.allclose(out3, policy_network_ref_bf16(state3, w1, b1, w2, b2), atol=1e-3), \
        "mismatch vs bf16 reference (odd batch)"

    print("KERNEL_OK")
</pallas_src>

<mosaic_0001>
module attributes {stable_mosaic.version = 11 : i64} {
  func.func @policy_net_kernel(%arg0: i32, %arg1: memref<8x16xbf16, #tpu.memory_space<vmem>>, %arg2: memref<16x32xbf16, #tpu.memory_space<vmem>>, %arg3: memref<1x32xf32, #tpu.memory_space<vmem>>, %arg4: memref<32x8xf32, #tpu.memory_space<vmem>>, %arg5: memref<1x8xf32, #tpu.memory_space<vmem>>, %arg6: memref<8x8xf32, #tpu.memory_space<vmem>>) attributes {dimension_semantics = [#tpu.dimension_semantics<parallel>], iteration_bounds = array<i64: 1>, scalar_prefetch = 0 : i64, scratch_operands = 0 : i64, tpu.core_type = #tpu.core_type<tc>, window_params = [{transform_indices = @transform_0, window_bounds = array<i64: 8, 16>}, {pipeline_mode = #tpu.pipeline_mode<synchronous>, transform_indices = @transform_1, window_bounds = array<i64: 16, 32>}, {pipeline_mode = #tpu.pipeline_mode<synchronous>, transform_indices = @transform_2, window_bounds = array<i64: 1, 32>}, {pipeline_mode = #tpu.pipeline_mode<synchronous>, transform_indices = @transform_3, window_bounds = array<i64: 32, 8>}, {pipeline_mode = #tpu.pipeline_mode<synchronous>, transform_indices = @transform_4, window_bounds = array<i64: 1, 8>}, {transform_indices = @transform_5, window_bounds = array<i64: 8, 8>}]} {
    %c0 = arith.constant 0 : index
    %c0_0 = arith.constant 0 : index
    %0 = vector.load %arg1[%c0, %c0_0] : memref<8x16xbf16, #tpu.memory_space<vmem>>, vector<8x16xbf16>
    %c0_1 = arith.constant 0 : index
    %c0_2 = arith.constant 0 : index
    %1 = vector.load %arg2[%c0_1, %c0_2] : memref<16x32xbf16, #tpu.memory_space<vmem>>, vector<16x32xbf16>
    %cst = arith.constant dense<0.000000e+00> : vector<8x32xf32>
    %2 = tpu.matmul %0, %1, %cst {dimension_numbers = #tpu.dot_dimension_numbers<[1], [0], [0], [1], [0, 0, 1, 1], [], []>} : vector<8x16xbf16>, vector<16x32xbf16>, vector<8x32xf32> -> vector<8x32xf32>
    %c0_3 = arith.constant 0 : index
    %c0_4 = arith.constant 0 : index
    %3 = vector.load %arg3[%c0_3, %c0_4] : memref<1x32xf32, #tpu.memory_space<vmem>>, vector<1x32xf32>
    %4 = vector.broadcast %3 : vector<1x32xf32> to vector<8x32xf32>
    %5 = arith.addf %2, %4 : vector<8x32xf32>
    %cst_5 = arith.constant 0.000000e+00 : f32
    %6 = vector.broadcast %cst_5 : f32 to vector<8x32xf32>
    %7 = arith.maximumf %5, %6 : vector<8x32xf32>
    %c0_6 = arith.constant 0 : index
    %c0_7 = arith.constant 0 : index
    %8 = vector.load %arg4[%c0_6, %c0_7] : memref<32x8xf32, #tpu.memory_space<vmem>>, vector<32x8xf32>
    %cst_8 = arith.constant dense<0.000000e+00> : vector<8x8xf32>
    %9 = tpu.matmul %7, %8, %cst_8 {dimension_numbers = #tpu.dot_dimension_numbers<[1], [0], [0], [1], [0, 0, 1, 1], [], []>} : vector<8x32xf32>, vector<32x8xf32>, vector<8x8xf32> -> vector<8x8xf32>
    %c0_9 = arith.constant 0 : index
    %c0_10 = arith.constant 0 : index
    %10 = vector.load %arg5[%c0_9, %c0_10] : memref<1x8xf32, #tpu.memory_space<vmem>>, vector<1x8xf32>
    %11 = vector.broadcast %10 : vector<1x8xf32> to vector<8x8xf32>
    %12 = arith.addf %9, %11 : vector<8x8xf32>
    %13 = math.tanh %12 : vector<8x8xf32>
    %c0_11 = arith.constant 0 : index
    %c0_12 = arith.constant 0 : index
    %14 = vector.load %arg6[%c0_11, %c0_12] : memref<8x8xf32, #tpu.memory_space<vmem>>, vector<8x8xf32>
    tpu.vector_store %arg6[%c0_11, %c0_12], %13 {strides = array<i32>} : memref<8x8xf32, #tpu.memory_space<vmem>>, vector<8x8xf32>,
    return
  }
  func.func @transform_0(%arg0: i32) -> (i32, i32) {
    %c0_i32 = arith.constant 0 : i32
    %c0_i32_0 = arith.constant 0 : i32
    return %arg0, %c0_i32 : i32, i32
  }
  func.func @transform_1(%arg0: i32) -> (i32, i32) {
    %c0_i32 = arith.constant 0 : i32
    %c0_i32_0 = arith.constant 0 : i32
    %c0_i32_1 = arith.constant 0 : i32
    return %c0_i32, %c0_i32_0 : i32, i32
  }
  func.func @transform_2(%arg0: i32) -> (i32, i32) {
    %c0_i32 = arith.constant 0 : i32
    %c0_i32_0 = arith.constant 0 : i32
    %c0_i32_1 = arith.constant 0 : i32
    return %c0_i32, %c0_i32_0 : i32, i32
  }
  func.func @transform_3(%arg0: i32) -> (i32, i32) {
    %c0_i32 = arith.constant 0 : i32
    %c0_i32_0 = arith.constant 0 : i32
    %c0_i32_1 = arith.constant 0 : i32
    return %c0_i32, %c0_i32_0 : i32, i32
  }
  func.func @transform_4(%arg0: i32) -> (i32, i32) {
    %c0_i32 = arith.constant 0 : i32
    %c0_i32_0 = arith.constant 0 : i32
    %c0_i32_1 = arith.constant 0 : i32
    return %c0_i32, %c0_i32_0 : i32, i32
  }
  func.func @transform_5(%arg0: i32) -> (i32, i32) {
    %c0_i32 = arith.constant 0 : i32
    %c0_i32_0 = arith.constant 0 : i32
    return %arg0, %c0_i32 : i32, i32
  }
}

</mosaic_0001>

<llo_original>
// kernel: policy_network.1
$region0: #{policy_network.1}
  #allocation0 [shape = 'u32[]', space=smem, size = 0x4, offset = 0x4, fixed_abs, tag = 'smem constant byte address 0x4 - core index']
  #allocation1 [shape = 'u32[144,128]{1,0:T(1,128)}', space=vmem, size = 0x12000, scoped, tag = 'internal scratch']
  %s0 = inlined_call_operand.vmem [shape: bf16[8,16], index: 0, kind: input, shape index: {}]
  %s1 = inlined_call_operand.vmem [shape: bf16[16,32], index: 1, kind: input, shape index: {}]
  %s2 = inlined_call_operand.vmem [shape: f32[1,32], index: 2, kind: input, shape index: {}]
  %s3 = inlined_call_operand.vmem [shape: f32[32,8], index: 3, kind: input, shape index: {}]
  %s4 = inlined_call_operand.vmem [shape: f32[1,8], index: 4, kind: input, shape index: {}]
  %s5 = inlined_call_operand.hbm [shape: f32[8,8], index: 5, kind: output, shape index: {}]
  %s6 = sld [smem:[#allocation0]]
  $region30: #{policy_network.1} parent=0
    _
  %s8 = ssub.s32 1, %s6
  %s9 = scalar_select 0, %s8, %s6
  $region1: #{policy_network.1} parent=0
    #allocation2 [shape = 'u8[4096]{0}', space=vmem, size = 0x1000, scoped, tag = 'output window, operand 0, single buffered']
    #allocation3 [shape = 's32[1]{0}', space=sflag, size = 0x4, scoped, tag = 'scoped memory for policy_network.1']
    %10 = vsyncpa [#allocation3], 0
    // Predicated region
    $region2: #{policy_network.1} parent=1 // pred_check
      _
    $region3: #{policy_network.1} parent=1 // pred_check_branch
      %12 = sbr.rel (0) target = $region5
    $region4: #{policy_network.1} parent=1 // pred_region
      _
    $region5: #{policy_network.1} parent=1 // pred_fallthru
      _
    // Predicated region
    $region6: #{policy_network.1} parent=1 // pred_check
      _
    $region7: #{policy_network.1} parent=1 // pred_check_branch
      %14 = sbr.rel (0) target = $region9
    $region8: #{policy_network.1} parent=1 // pred_region
      _
    $region9: #{policy_network.1} parent=1 // pred_fallthru
      _
    // Predicated region
    $region10: #{policy_network.1} parent=1 // pred_check
      _
    $region11: #{policy_network.1} parent=1 // pred_check_branch
      %16 = sbr.rel (0) target = $region13
    $region12: #{policy_network.1} parent=1 // pred_region
      _
    $region13: #{policy_network.1} parent=1 // pred_fallthru
      _
    // Predicated region
    $region14: #{policy_network.1} parent=1 // pred_check
      _
    $region15: #{policy_network.1} parent=1 // pred_check_branch
      %18 = sbr.rel (0) target = $region17
    $region16: #{policy_network.1} parent=1 // pred_region
      _
    $region17: #{policy_network.1} parent=1 // pred_fallthru
      _
    // Predicated region
    $region18: #{policy_network.1} parent=1 // pred_check
      _
    $region19: #{policy_network.1} parent=1 // pred_check_branch
      %20 = sbr.rel (0) target = $region21
    $region20: #{policy_network.1} parent=1 // pred_region
      _
    $region21: #{policy_network.1} parent=1 // pred_fallthru
      _
    %v22 = vld [vmem:[%s0] sm:$0xf]
    %v23 = vld [vmem:[%s1] sm:$0xf]
    %v24 = vld [vmem:[%s1 + $0x4] sm:$0xf]
    %v25 = vld [vmem:[%s2] sm:$0x1]
    %v27 = vlaneseq
    %v28 = vshrl.u32 %v27, 7
    %v29 = vsub.s32 0, %v28
    %v30 = vrot.slane %v25, %v29
    %v34 = vunpack.c.l.b16 %v23
    %v35 = vunpack.c.l.b16 %v24
    %v36 = vpack.c.b16 %v35, %v34
    %vm38 = vcmask 130048
    %v40 = vsel %vm38, %v22, 0
    %42 = vmatprep.subr.bf16.mxu0 0
    %43 = vmatpush1.bf16.msra.mxu0 %v36
    %44 = vmatprep.subr.bf16.mxu0 0
    %45 = vmatpush1.bf16.msra.mxu0 0
    %46 = vmatprep.subr.bf16.mxu0 0
    %47 = vmatpush1.bf16.msra.mxu0 0
    %48 = vmatprep.subr.bf16.mxu0 0
    %49 = vmatpush1.bf16.msra.mxu0 0
    %50 = vmatprep.subr.bf16.mxu0 0
    %51 = vmatpush1.bf16.msra.mxu0 0
    %52 = vmatprep.subr.bf16.mxu0 0
    %53 = vmatpush1.bf16.msra.mxu0 0
    %54 = vmatprep.subr.bf16.mxu0 0
    %55 = vmatpush1.bf16.msra.mxu0 0
    %56 = vmatprep.subr.bf16.mxu0 0
    %57 = vmatpush1.bf16.msra.mxu0 0
    %58 = vmatprep.subr.bf16.mxu0 0
    %59 = vmatpush1.bf16.msra.mxu0 0
    %60 = vmatprep.subr.bf16.mxu0 0
    %61 = vmatpush1.bf16.msra.mxu0 0
    %62 = vmatprep.subr.bf16.mxu0 0
    %63 = vmatpush1.bf16.msra.mxu0 0
    %64 = vmatprep.subr.bf16.mxu0 0
    %65 = vmatpush1.bf16.msra.mxu0 0
    %66 = vmatprep.subr.bf16.mxu0 0
    %67 = vmatpush1.bf16.msra.mxu0 0
    %68 = vmatprep.subr.bf16.mxu0 0
    %69 = vmatpush1.bf16.msra.mxu0 0
    %70 = vmatprep.subr.bf16.mxu0 0
    %71 = vmatpush1.bf16.msra.mxu0 0
    %72 = vmatprep.subr.bf16.mxu0 0
    %73 = vmatpush1.bf16.msra.mxu0 0
    %74 = vmatprep.mubr.bf16.mxu0 0
    %75 = vmatmul.mubr.bf16.gmra.mrb[0].mxu0 %v40
    %v76 = vpop.f32.mrb[0].mxu0
    %v77 = vadd.f32 %v30, %v76
    %v78 = vpop.f32.mrb[0].mxu0
    %v79 = vpop.f32.mrb[0].mxu0
    %v80 = vpop.f32.mrb[0].mxu0
    %81 = vdwg.mxu0
    %v82 = vmax.f32 %v77, 0.0
    %v83 = vld [vmem:[%s3] sm:$0xff]
    %v84 = vld [vmem:[%s3 + $0x8] sm:$0xff]
    %v85 = vld [vmem:[%s3 + $0x10] sm:$0xff]
    %v86 = vld [vmem:[%s3 + $0x18] sm:$0xff]
    %v87 = vld [vmem:[%s4] sm:$0x1]
    %v89 = vlaneseq
    %v90 = vshrl.u32 %v89, 7
    %v91 = vsub.s32 0, %v90
    %v92 = vrot.slane %v87, %v91
    %vm94 = vcmask 261120
    %v96 = vsel %vm94, %v82, 0
    %98 = vmatprep.subr.mxu0 0.0
    %99 = vmatpush1.msra.mxu0 %v83
    %100 = vmatprep.subr.mxu0 0.0
    %101 = vmatpush1.msra.mxu0 %v84
    %102 = vmatprep.subr.mxu0 0.0
    %103 = vmatpush1.msra.mxu0 %v85
    %104 = vmatprep.subr.mxu0 0.0
    %105 = vmatpush1.msra.mxu0 %v86
    %106 = vmatprep.subr.mxu0 0.0
    %107 = vmatpush1.msra.mxu0 0.0
    %108 = vmatprep.subr.mxu0 0.0
    %109 = vmatpush1.msra.mxu0 0.0
    %110 = vmatprep.subr.mxu0 0.0
    %111 = vmatpush1.msra.mxu0 0.0
    %112 = vmatprep.subr.mxu0 0.0
    %113 = vmatpush1.msra.mxu0 0.0
    %114 = vmatprep.subr.mxu0 0.0
    %115 = vmatpush1.msra.mxu0 0.0
    %116 = vmatprep.subr.mxu0 0.0
    %117 = vmatpush1.msra.mxu0 0.0
    %118 = vmatprep.subr.mxu0 0.0
    %119 = vmatpush1.msra.mxu0 0.0
    %120 = vmatprep.subr.mxu0 0.0
    %121 = vmatpush1.msra.mxu0 0.0
    %122 = vmatprep.subr.mxu0 0.0
    %123 = vmatpush1.msra.mxu0 0.0
    %124 = vmatprep.subr.mxu0 0.0
    %125 = vmatpush1.msra.mxu0 0.0
    %126 = vmatprep.subr.mxu0 0.0
    %127 = vmatpush1.msra.mxu0 0.0
    %128 = vmatprep.subr.mxu0 0.0
    %129 = vmatpush1.msra.mxu0 0.0
    %130 = vmatprep.subr.mxu0 0.0
    %131 = vmatpush1.msra.mxu0 0.0
    %132 = vmatprep.subr.mxu0 0.0
    %133 = vmatpush1.msra.mxu0 0.0
    %134 = vmatprep.subr.mxu0 0.0
    %135 = vmatpush1.msra.mxu0 0.0
    %136 = vmatprep.subr.mxu0 0.0
    %137 = vmatpush1.msra.mxu0 0.0
    %138 = vmatprep.subr.mxu0 0.0
    %139 = vmatpush1.msra.mxu0 0.0
    %140 = vmatprep.subr.mxu0 0.0
    %141 = vmatpush1.msra.mxu0 0.0
    %142 = vmatprep.subr.mxu0 0.0
    %143 = vmatpush1.msra.mxu0 0.0
    %144 = vmatprep.subr.mxu0 0.0
    %145 = vmatpush1.msra.mxu0 0.0
    %146 = vmatprep.subr.mxu0 0.0
    %147 = vmatpush1.msra.mxu0 0.0
    %148 = vmatprep.subr.mxu0 0.0
    %149 = vmatpush1.msra.mxu0 0.0
    %150 = vmatprep.subr.mxu0 0.0
    %151 = vmatpush1.msra.mxu0 0.0
    %152 = vmatprep.subr.mxu0 0.0
    %153 = vmatpush1.msra.mxu0 0.0
    %154 = vmatprep.subr.mxu0 0.0
    %155 = vmatpush1.msra.mxu0 0.0
    %156 = vmatprep.subr.mxu0 0.0
    %157 = vmatpush1.msra.mxu0 0.0
    %158 = vmatprep.subr.mxu0 0.0
    %159 = vmatpush1.msra.mxu0 0.0
    %160 = vmatprep.subr.mxu0 0.0
    %161 = vmatpush1.msra.mxu0 0.0
    %162 = vmatprep.mubr.f32.mxu0 0.0
    %163 = vmatmul.mubr.f32.gmra.mrb[0].mxu0 %v96
    %v164 = vpop.f32.mrb[0].mxu0
    %v165 = vadd.f32 %v92, %v164
    %v166 = vpop.f32.mrb[0].mxu0
    %167 = vdwg.mxu0
    %v168 = vtanh.pop %v165
    %vm169 = vcmask 64512
    %170 = vst.msk [vmem:[#allocation2] sm:$0xff] %vm169, %v168
    // Predicated region
    $region22: #{policy_network.1} parent=1 // pred_check
      _
    $region23: #{policy_network.1} parent=1 // pred_check_branch
      %172 = sbr.rel (0) target = $region25
    $region24: #{policy_network.1} parent=1 // pred_region
      %s174 = ssub.s32 128, 128
      %175 = vsyncadd [#allocation3], %s174
      %s177 = sshll.u32 [#allocation2], 4
      %s178 = int_to_ptr.vmem [resolvable:$true] %s177
      %180 = dma.vmem_to_hbm [thread:$0]  %s178, 128, %s5, [#allocation3]
    $region25: #{policy_network.1} parent=1 // pred_fallthru
      _
    // Predicated region
    $region26: #{policy_network.1} parent=1 // pred_check
      _
    $region27: #{policy_network.1} parent=1 // pred_check_branch
      %182 = sbr.rel (0) target = $region29
    $region28: #{policy_network.1} parent=1 // pred_region
      %183 = dma.done [#allocation3], 128
    $region29: #{policy_network.1} parent=1 // pred_fallthru
      _
    %184 = vsyncpa [#allocation3], 1

</llo_original>
